<compile_context>
chip_gen: v7x
topology: tpu7x:2x2x1
jax: 0.10.0
libtpu: 0.0.40
codegen_flags: <defaults>
</compile_context>

<pallas_src>
import jax
import jax.numpy as jnp
from jax.experimental import pallas as pl
from jax.experimental.pallas import tpu as pltpu


def _encoder_kernel(x_ref,                   # (T*B, D) time-major input (row t*B+b)
                    w_ih_ref, b_ih_ref,      # fused input-side GRU weights  (D, 3H), (1, 3H)
                    w_hh_ref, b_hh_ref,      # fused hidden-side GRU weights (H, 3H), (1, 3H)
                    w1_ref, b1_ref,          # MLP head layer 1              (H, H),  (1, H)
                    w2_ref, b2_ref,          # MLP head layer 2              (H, O),  (1, O)
                    out_ref):                # (B, O)
    TB, D = x_ref.shape
    B = out_ref.shape[0]
    T = TB // B
    H = w_hh_ref.shape[0]

    # ---- input-side projections for every time step in ONE matmul ------------
    # (T*B, D) @ (D, 3H) -> (T*B, 3H); gate order is [r | z | n].
    gx = jnp.dot(x_ref[...], w_ih_ref[...],
                 preferred_element_type=jnp.float32) + b_ih_ref[...]

    w_hh = w_hh_ref[...]
    # Hoisted broadcast: one broadcast_in_dim total, not T of them.
    b_hh_b = jnp.broadcast_to(b_hh_ref[...], (B, 3 * H))

    # ---- GRU recurrence over the time-reversed sequence -----------------------
    # T is static -> fully unrolled straight-line code; h stays in vregs.
    h = jnp.zeros((B, H), jnp.float32)
    for step in range(T):
        tr = T - 1 - step                       # reversed time index (static)
        gx_t = gx[tr * B:(tr + 1) * B, :]       # aligned sublane slab (B, 3H)
        gh = jnp.dot(h, w_hh,
                     preferred_element_type=jnp.float32) + b_hh_b   # (B, 3H)

        # PyTorch nn.GRU cell semantics (gate order r, z, n); r/z sigmoid fused.
        a = gx_t + gh
        rz = jax.nn.sigmoid(a[:, :2 * H])
        r = rz[:, :H]
        z = rz[:, H:]
        n = jnp.tanh(gx_t[:, 2 * H:] + r * gh[:, 2 * H:])
        h = (1.0 - z) * n + z * h

    # ---- MLP head: Linear -> ReLU -> Linear -----------------------------------
    h1 = jnp.dot(h, w1_ref[...], preferred_element_type=jnp.float32) + b1_ref[...]
    h1 = jnp.maximum(h1, 0.0)
    out = jnp.dot(h1, w2_ref[...], preferred_element_type=jnp.float32) + b2_ref[...]
    out_ref[...] = out.astype(out_ref.dtype)


def encoder_forward(data, params):
    """data: (B, T, D) float32; returns (B, output_dim) float32."""
    B, T, D = data.shape
    O = params["w2"].shape[1]

    # PyTorch permute(1,0,2): (B,T,D) -> (T,B,D); flatten to time-major (T*B, D).
    # This 4 KiB wrapper transpose is free and makes every per-step gate slab an
    # aligned sublane slice inside the kernel.
    x_tm = jnp.transpose(data.astype(jnp.float32), (1, 0, 2)).reshape(T * B, D)

    args = (x_tm,
            params["w_ih"], params["b_ih"],
            params["w_hh"], params["b_hh"],
            params["w1"], params["b1"],
            params["w2"], params["b2"])

    vmem_specs = [pl.BlockSpec(memory_space=pltpu.MemorySpace.VMEM) for _ in args]

    return pl.pallas_call(
        _encoder_kernel,
        out_shape=jax.ShapeDtypeStruct((B, O), jnp.float32),
        in_specs=vmem_specs,
        out_specs=pl.BlockSpec(memory_space=pltpu.MemorySpace.VMEM),
    )(*args)


def make_params(key, input_dim, hidden_dim, output_dim):
    """Deterministic synthetic parameters (shapes follow nn.GRU / nn.Linear),
    stored fused and pre-transposed so the kernel computes x @ W."""
    ks = jax.random.split(key, 6)
    D, H, O = input_dim, hidden_dim, output_dim
    s = 1.0 / jnp.sqrt(H)

    def u(k, shape):
        return jax.random.uniform(k, shape, jnp.float32, -s, s)

    return {
        # GRU: fused gate order [r | z | n]
        "w_ih": u(ks[0], (D, 3 * H)),
        "w_hh": u(ks[1], (H, 3 * H)),
        "b_ih": u(ks[2], (1, 3 * H)),
        "b_hh": u(ks[3], (1, 3 * H)),
        # hiddens_to_output, init_network_weights(std=0.001): normal weights, zero bias
        "w1": 0.001 * jax.random.normal(ks[4], (H, H), jnp.float32),
        "b1": jnp.zeros((1, H), jnp.float32),
        "w2": 0.001 * jax.random.normal(ks[5], (H, O), jnp.float32),
        "b2": jnp.zeros((1, O), jnp.float32),
    }


def encoder_reference(data, params):
    """Pure-JAX reference (lax.scan GRU) for correctness checking."""
    x_tm = jnp.transpose(data, (1, 0, 2))[::-1]  # (T, B, D), time-reversed
    B = data.shape[0]
    H = params["w_hh"].shape[0]

    def step(h, x):
        gx = x @ params["w_ih"] + params["b_ih"]
        gh = h @ params["w_hh"] + params["b_hh"]
        r = jax.nn.sigmoid(gx[:, :H] + gh[:, :H])
        z = jax.nn.sigmoid(gx[:, H:2 * H] + gh[:, H:2 * H])
        n = jnp.tanh(gx[:, 2 * H:] + r * gh[:, 2 * H:])
        h_new = (1.0 - z) * n + z * h
        return h_new, None

    h_last, _ = jax.lax.scan(step, jnp.zeros((B, H), jnp.float32), x_tm)
    h1 = jnp.maximum(h_last @ params["w1"] + params["b1"], 0.0)
    return h1 @ params["w2"] + params["b2"]


if __name__ == "__main__":
    # small shapes consistent with the module's forward
    batch, seq, input_dim, hidden_dim, output_dim = 8, 8, 16, 32, 8

    key = jax.random.PRNGKey(0)
    k_data, k_params = jax.random.split(key)
    data = jax.random.normal(k_data, (batch, seq, input_dim), jnp.float32)
    params = make_params(k_params, input_dim, hidden_dim, output_dim)

    out = encoder_forward(data, params)
    out = jax.block_until_ready(out)

    ref = encoder_reference(data, params)
    assert out.shape == (batch, output_dim)
    assert jnp.allclose(out, ref, atol=1e-4, rtol=1e-4), "mismatch vs JAX reference"

    print("KERNEL_OK")
</pallas_src>

<mosaic_0001>
module attributes {stable_mosaic.version = 11 : i64} {
  func.func @_encoder_kernel(%arg0: memref<64x16xf32, #tpu.memory_space<vmem>>, %arg1: memref<16x96xf32, #tpu.memory_space<vmem>>, %arg2: memref<1x96xf32, #tpu.memory_space<vmem>>, %arg3: memref<32x96xf32, #tpu.memory_space<vmem>>, %arg4: memref<1x96xf32, #tpu.memory_space<vmem>>, %arg5: memref<32x32xf32, #tpu.memory_space<vmem>>, %arg6: memref<1x32xf32, #tpu.memory_space<vmem>>, %arg7: memref<32x8xf32, #tpu.memory_space<vmem>>, %arg8: memref<1x8xf32, #tpu.memory_space<vmem>>, %arg9: memref<8x8xf32, #tpu.memory_space<vmem>>) attributes {dimension_semantics = [], scalar_prefetch = 0 : i64, scratch_operands = 0 : i64, tpu.core_type = #tpu.core_type<tc>} {
    %c0 = arith.constant 0 : index
    %c0_0 = arith.constant 0 : index
    %0 = vector.load %arg0[%c0, %c0_0] : memref<64x16xf32, #tpu.memory_space<vmem>>, vector<64x16xf32>
    %c0_1 = arith.constant 0 : index
    %c0_2 = arith.constant 0 : index
    %1 = vector.load %arg1[%c0_1, %c0_2] : memref<16x96xf32, #tpu.memory_space<vmem>>, vector<16x96xf32>
    %cst = arith.constant dense<0.000000e+00> : vector<64x96xf32>
    %2 = tpu.matmul %0, %1, %cst {dimension_numbers = #tpu.dot_dimension_numbers<[1], [0], [0], [1], [0, 0, 1, 1], [], []>} : vector<64x16xf32>, vector<16x96xf32>, vector<64x96xf32> -> vector<64x96xf32>
    %c0_3 = arith.constant 0 : index
    %c0_4 = arith.constant 0 : index
    %3 = vector.load %arg2[%c0_3, %c0_4] : memref<1x96xf32, #tpu.memory_space<vmem>>, vector<1x96xf32>
    %4 = vector.broadcast %3 : vector<1x96xf32> to vector<64x96xf32>
    %5 = arith.addf %2, %4 : vector<64x96xf32>
    %c0_5 = arith.constant 0 : index
    %c0_6 = arith.constant 0 : index
    %6 = vector.load %arg3[%c0_5, %c0_6] : memref<32x96xf32, #tpu.memory_space<vmem>>, vector<32x96xf32>
    %c0_7 = arith.constant 0 : index
    %c0_8 = arith.constant 0 : index
    %7 = vector.load %arg4[%c0_7, %c0_8] : memref<1x96xf32, #tpu.memory_space<vmem>>, vector<1x96xf32>
    %8 = vector.shape_cast %7 : vector<1x96xf32> to vector<1x96xf32>
    %9 = vector.broadcast %8 : vector<1x96xf32> to vector<8x96xf32>
    %cst_9 = arith.constant 0.000000e+00 : f32
    %10 = vector.broadcast %cst_9 : f32 to vector<8x32xf32>
    %11 = vector.extract_strided_slice %5 {offsets = [56, 0], sizes = [8, 96], strides = [1, 1]} : vector<64x96xf32> to vector<8x96xf32>
    %cst_10 = arith.constant dense<0.000000e+00> : vector<8x96xf32>
    %12 = tpu.matmul %10, %6, %cst_10 {dimension_numbers = #tpu.dot_dimension_numbers<[1], [0], [0], [1], [0, 0, 1, 1], [], []>} : vector<8x32xf32>, vector<32x96xf32>, vector<8x96xf32> -> vector<8x96xf32>
    %13 = arith.addf %12, %9 : vector<8x96xf32>
    %14 = arith.addf %11, %13 : vector<8x96xf32>
    %15 = vector.extract_strided_slice %14 {offsets = [0, 0], sizes = [8, 64], strides = [1, 1]} : vector<8x96xf32> to vector<8x64xf32>
    %16 = arith.negf %15 : vector<8x64xf32>
    %17 = math.exp %16 : vector<8x64xf32>
    %cst_11 = arith.constant 1.000000e+00 : f32
    %18 = vector.broadcast %cst_11 : f32 to vector<8x64xf32>
    %19 = arith.addf %18, %17 : vector<8x64xf32>
    %20 = arith.divf %18, %19 : vector<8x64xf32>
    %21 = vector.extract_strided_slice %20 {offsets = [0, 0], sizes = [8, 32], strides = [1, 1]} : vector<8x64xf32> to vector<8x32xf32>
    %22 = vector.extract_strided_slice %20 {offsets = [0, 32], sizes = [8, 32], strides = [1, 1]} : vector<8x64xf32> to vector<8x32xf32>
    %23 = vector.extract_strided_slice %11 {offsets = [0, 64], sizes = [8, 32], strides = [1, 1]} : vector<8x96xf32> to vector<8x32xf32>
    %24 = vector.extract_strided_slice %13 {offsets = [0, 64], sizes = [8, 32], strides = [1, 1]} : vector<8x96xf32> to vector<8x32xf32>
    %25 = arith.mulf %21, %24 : vector<8x32xf32>
    %26 = arith.addf %23, %25 : vector<8x32xf32>
    %27 = math.tanh %26 : vector<8x32xf32>
    %cst_12 = arith.constant 1.000000e+00 : f32
    %28 = vector.broadcast %cst_12 : f32 to vector<8x32xf32>
    %29 = arith.subf %28, %22 : vector<8x32xf32>
    %30 = arith.mulf %29, %27 : vector<8x32xf32>
    %31 = arith.mulf %22, %10 : vector<8x32xf32>
    %32 = arith.addf %30, %31 : vector<8x32xf32>
    %33 = vector.extract_strided_slice %5 {offsets = [48, 0], sizes = [8, 96], strides = [1, 1]} : vector<64x96xf32> to vector<8x96xf32>
    %cst_13 = arith.constant dense<0.000000e+00> : vector<8x96xf32>
    %34 = tpu.matmul %32, %6, %cst_13 {dimension_numbers = #tpu.dot_dimension_numbers<[1], [0], [0], [1], [0, 0, 1, 1], [], []>} : vector<8x32xf32>, vector<32x96xf32>, vector<8x96xf32> -> vector<8x96xf32>
    %35 = arith.addf %34, %9 : vector<8x96xf32>
    %36 = arith.addf %33, %35 : vector<8x96xf32>
    %37 = vector.extract_strided_slice %36 {offsets = [0, 0], sizes = [8, 64], strides = [1, 1]} : vector<8x96xf32> to vector<8x64xf32>
    %38 = arith.negf %37 : vector<8x64xf32>
    %39 = math.exp %38 : vector<8x64xf32>
    %cst_14 = arith.constant 1.000000e+00 : f32
    %40 = vector.broadcast %cst_14 : f32 to vector<8x64xf32>
    %41 = arith.addf %40, %39 : vector<8x64xf32>
    %42 = arith.divf %40, %41 : vector<8x64xf32>
    %43 = vector.extract_strided_slice %42 {offsets = [0, 0], sizes = [8, 32], strides = [1, 1]} : vector<8x64xf32> to vector<8x32xf32>
    %44 = vector.extract_strided_slice %42 {offsets = [0, 32], sizes = [8, 32], strides = [1, 1]} : vector<8x64xf32> to vector<8x32xf32>
    %45 = vector.extract_strided_slice %33 {offsets = [0, 64], sizes = [8, 32], strides = [1, 1]} : vector<8x96xf32> to vector<8x32xf32>
    %46 = vector.extract_strided_slice %35 {offsets = [0, 64], sizes = [8, 32], strides = [1, 1]} : vector<8x96xf32> to vector<8x32xf32>
    %47 = arith.mulf %43, %46 : vector<8x32xf32>
    %48 = arith.addf %45, %47 : vector<8x32xf32>
    %49 = math.tanh %48 : vector<8x32xf32>
    %cst_15 = arith.constant 1.000000e+00 : f32
    %50 = vector.broadcast %cst_15 : f32 to vector<8x32xf32>
    %51 = arith.subf %50, %44 : vector<8x32xf32>
    %52 = arith.mulf %51, %49 : vector<8x32xf32>
    %53 = arith.mulf %44, %32 : vector<8x32xf32>
    %54 = arith.addf %52, %53 : vector<8x32xf32>
    %55 = vector.extract_strided_slice %5 {offsets = [40, 0], sizes = [8, 96], strides = [1, 1]} : vector<64x96xf32> to vector<8x96xf32>
    %cst_16 = arith.constant dense<0.000000e+00> : vector<8x96xf32>
    %56 = tpu.matmul %54, %6, %cst_16 {dimension_numbers = #tpu.dot_dimension_numbers<[1], [0], [0], [1], [0, 0, 1, 1], [], []>} : vector<8x32xf32>, vector<32x96xf32>, vector<8x96xf32> -> vector<8x96xf32>
    %57 = arith.addf %56, %9 : vector<8x96xf32>
    %58 = arith.addf %55, %57 : vector<8x96xf32>
    %59 = vector.extract_strided_slice %58 {offsets = [0, 0], sizes = [8, 64], strides = [1, 1]} : vector<8x96xf32> to vector<8x64xf32>
    %60 = arith.negf %59 : vector<8x64xf32>
    %61 = math.exp %60 : vector<8x64xf32>
    %cst_17 = arith.constant 1.000000e+00 : f32
    %62 = vector.broadcast %cst_17 : f32 to vector<8x64xf32>
    %63 = arith.addf %62, %61 : vector<8x64xf32>
    %64 = arith.divf %62, %63 : vector<8x64xf32>
    %65 = vector.extract_strided_slice %64 {offsets = [0, 0], sizes = [8, 32], strides = [1, 1]} : vector<8x64xf32> to vector<8x32xf32>
    %66 = vector.extract_strided_slice %64 {offsets = [0, 32], sizes = [8, 32], strides = [1, 1]} : vector<8x64xf32> to vector<8x32xf32>
    %67 = vector.extract_strided_slice %55 {offsets = [0, 64], sizes = [8, 32], strides = [1, 1]} : vector<8x96xf32> to vector<8x32xf32>
    %68 = vector.extract_strided_slice %57 {offsets = [0, 64], sizes = [8, 32], strides = [1, 1]} : vector<8x96xf32> to vector<8x32xf32>
    %69 = arith.mulf %65, %68 : vector<8x32xf32>
    %70 = arith.addf %67, %69 : vector<8x32xf32>
    %71 = math.tanh %70 : vector<8x32xf32>
    %cst_18 = arith.constant 1.000000e+00 : f32
    %72 = vector.broadcast %cst_18 : f32 to vector<8x32xf32>
    %73 = arith.subf %72, %66 : vector<8x32xf32>
    %74 = arith.mulf %73, %71 : vector<8x32xf32>
    %75 = arith.mulf %66, %54 : vector<8x32xf32>
    %76 = arith.addf %74, %75 : vector<8x32xf32>
    %77 = vector.extract_strided_slice %5 {offsets = [32, 0], sizes = [8, 96], strides = [1, 1]} : vector<64x96xf32> to vector<8x96xf32>
    %cst_19 = arith.constant dense<0.000000e+00> : vector<8x96xf32>
    %78 = tpu.matmul %76, %6, %cst_19 {dimension_numbers = #tpu.dot_dimension_numbers<[1], [0], [0], [1], [0, 0, 1, 1], [], []>} : vector<8x32xf32>, vector<32x96xf32>, vector<8x96xf32> -> vector<8x96xf32>
    %79 = arith.addf %78, %9 : vector<8x96xf32>
    %80 = arith.addf %77, %79 : vector<8x96xf32>
    %81 = vector.extract_strided_slice %80 {offsets = [0, 0], sizes = [8, 64], strides = [1, 1]} : vector<8x96xf32> to vector<8x64xf32>
    %82 = arith.negf %81 : vector<8x64xf32>
    %83 = math.exp %82 : vector<8x64xf32>
    %cst_20 = arith.constant 1.000000e+00 : f32
    %84 = vector.broadcast %cst_20 : f32 to vector<8x64xf32>
    %85 = arith.addf %84, %83 : vector<8x64xf32>
    %86 = arith.divf %84, %85 : vector<8x64xf32>
    %87 = vector.extract_strided_slice %86 {offsets = [0, 0], sizes = [8, 32], strides = [1, 1]} : vector<8x64xf32> to vector<8x32xf32>
    %88 = vector.extract_strided_slice %86 {offsets = [0, 32], sizes = [8, 32], strides = [1, 1]} : vector<8x64xf32> to vector<8x32xf32>
    %89 = vector.extract_strided_slice %77 {offsets = [0, 64], sizes = [8, 32], strides = [1, 1]} : vector<8x96xf32> to vector<8x32xf32>
    %90 = vector.extract_strided_slice %79 {offsets = [0, 64], sizes = [8, 32], strides = [1, 1]} : vector<8x96xf32> to vector<8x32xf32>
    %91 = arith.mulf %87, %90 : vector<8x32xf32>
    %92 = arith.addf %89, %91 : vector<8x32xf32>
    %93 = math.tanh %92 : vector<8x32xf32>
    %cst_21 = arith.constant 1.000000e+00 : f32
    %94 = vector.broadcast %cst_21 : f32 to vector<8x32xf32>
    %95 = arith.subf %94, %88 : vector<8x32xf32>
    %96 = arith.mulf %95, %93 : vector<8x32xf32>
    %97 = arith.mulf %88, %76 : vector<8x32xf32>
    %98 = arith.addf %96, %97 : vector<8x32xf32>
    %99 = vector.extract_strided_slice %5 {offsets = [24, 0], sizes = [8, 96], strides = [1, 1]} : vector<64x96xf32> to vector<8x96xf32>
    %cst_22 = arith.constant dense<0.000000e+00> : vector<8x96xf32>
    %100 = tpu.matmul %98, %6, %cst_22 {dimension_numbers = #tpu.dot_dimension_numbers<[1], [0], [0], [1], [0, 0, 1, 1], [], []>} : vector<8x32xf32>, vector<32x96xf32>, vector<8x96xf32> -> vector<8x96xf32>
    %101 = arith.addf %100, %9 : vector<8x96xf32>
    %102 = arith.addf %99, %101 : vector<8x96xf32>
    %103 = vector.extract_strided_slice %102 {offsets = [0, 0], sizes = [8, 64], strides = [1, 1]} : vector<8x96xf32> to vector<8x64xf32>
    %104 = arith.negf %103 : vector<8x64xf32>
    %105 = math.exp %104 : vector<8x64xf32>
    %cst_23 = arith.constant 1.000000e+00 : f32
    %106 = vector.broadcast %cst_23 : f32 to vector<8x64xf32>
    %107 = arith.addf %106, %105 : vector<8x64xf32>
    %108 = arith.divf %106, %107 : vector<8x64xf32>
    %109 = vector.extract_strided_slice %108 {offsets = [0, 0], sizes = [8, 32], strides = [1, 1]} : vector<8x64xf32> to vector<8x32xf32>
    %110 = vector.extract_strided_slice %108 {offsets = [0, 32], sizes = [8, 32], strides = [1, 1]} : vector<8x64xf32> to vector<8x32xf32>
    %111 = vector.extract_strided_slice %99 {offsets = [0, 64], sizes = [8, 32], strides = [1, 1]} : vector<8x96xf32> to vector<8x32xf32>
    %112 = vector.extract_strided_slice %101 {offsets = [0, 64], sizes = [8, 32], strides = [1, 1]} : vector<8x96xf32> to vector<8x32xf32>
    %113 = arith.mulf %109, %112 : vector<8x32xf32>
    %114 = arith.addf %111, %113 : vector<8x32xf32>
    %115 = math.tanh %114 : vector<8x32xf32>
    %cst_24 = arith.constant 1.000000e+00 : f32
    %116 = vector.broadcast %cst_24 : f32 to vector<8x32xf32>
    %117 = arith.subf %116, %110 : vector<8x32xf32>
    %118 = arith.mulf %117, %115 : vector<8x32xf32>
    %119 = arith.mulf %110, %98 : vector<8x32xf32>
    %120 = arith.addf %118, %119 : vector<8x32xf32>
    %121 = vector.extract_strided_slice %5 {offsets = [16, 0], sizes = [8, 96], strides = [1, 1]} : vector<64x96xf32> to vector<8x96xf32>
    %cst_25 = arith.constant dense<0.000000e+00> : vector<8x96xf32>
    %122 = tpu.matmul %120, %6, %cst_25 {dimension_numbers = #tpu.dot_dimension_numbers<[1], [0], [0], [1], [0, 0, 1, 1], [], []>} : vector<8x32xf32>, vector<32x96xf32>, vector<8x96xf32> -> vector<8x96xf32>
    %123 = arith.addf %122, %9 : vector<8x96xf32>
    %124 = arith.addf %121, %123 : vector<8x96xf32>
    %125 = vector.extract_strided_slice %124 {offsets = [0, 0], sizes = [8, 64], strides = [1, 1]} : vector<8x96xf32> to vector<8x64xf32>
    %126 = arith.negf %125 : vector<8x64xf32>
    %127 = math.exp %126 : vector<8x64xf32>
    %cst_26 = arith.constant 1.000000e+00 : f32
    %128 = vector.broadcast %cst_26 : f32 to vector<8x64xf32>
    %129 = arith.addf %128, %127 : vector<8x64xf32>
    %130 = arith.divf %128, %129 : vector<8x64xf32>
    %131 = vector.extract_strided_slice %130 {offsets = [0, 0], sizes = [8, 32], strides = [1, 1]} : vector<8x64xf32> to vector<8x32xf32>
    %132 = vector.extract_strided_slice %130 {offsets = [0, 32], sizes = [8, 32], strides = [1, 1]} : vector<8x64xf32> to vector<8x32xf32>
    %133 = vector.extract_strided_slice %121 {offsets = [0, 64], sizes = [8, 32], strides = [1, 1]} : vector<8x96xf32> to vector<8x32xf32>
    %134 = vector.extract_strided_slice %123 {offsets = [0, 64], sizes = [8, 32], strides = [1, 1]} : vector<8x96xf32> to vector<8x32xf32>
    %135 = arith.mulf %131, %134 : vector<8x32xf32>
    %136 = arith.addf %133, %135 : vector<8x32xf32>
    %137 = math.tanh %136 : vector<8x32xf32>
    %cst_27 = arith.constant 1.000000e+00 : f32
    %138 = vector.broadcast %cst_27 : f32 to vector<8x32xf32>
    %139 = arith.subf %138, %132 : vector<8x32xf32>
    %140 = arith.mulf %139, %137 : vector<8x32xf32>
    %141 = arith.mulf %132, %120 : vector<8x32xf32>
    %142 = arith.addf %140, %141 : vector<8x32xf32>
    %143 = vector.extract_strided_slice %5 {offsets = [8, 0], sizes = [8, 96], strides = [1, 1]} : vector<64x96xf32> to vector<8x96xf32>
    %cst_28 = arith.constant dense<0.000000e+00> : vector<8x96xf32>
    %144 = tpu.matmul %142, %6, %cst_28 {dimension_numbers = #tpu.dot_dimension_numbers<[1], [0], [0], [1], [0, 0, 1, 1], [], []>} : vector<8x32xf32>, vector<32x96xf32>, vector<8x96xf32> -> vector<8x96xf32>
    %145 = arith.addf %144, %9 : vector<8x96xf32>
    %146 = arith.addf %143, %145 : vector<8x96xf32>
    %147 = vector.extract_strided_slice %146 {offsets = [0, 0], sizes = [8, 64], strides = [1, 1]} : vector<8x96xf32> to vector<8x64xf32>
    %148 = arith.negf %147 : vector<8x64xf32>
    %149 = math.exp %148 : vector<8x64xf32>
    %cst_29 = arith.constant 1.000000e+00 : f32
    %150 = vector.broadcast %cst_29 : f32 to vector<8x64xf32>
    %151 = arith.addf %150, %149 : vector<8x64xf32>
    %152 = arith.divf %150, %151 : vector<8x64xf32>
    %153 = vector.extract_strided_slice %152 {offsets = [0, 0], sizes = [8, 32], strides = [1, 1]} : vector<8x64xf32> to vector<8x32xf32>
    %154 = vector.extract_strided_slice %152 {offsets = [0, 32], sizes = [8, 32], strides = [1, 1]} : vector<8x64xf32> to vector<8x32xf32>
    %155 = vector.extract_strided_slice %143 {offsets = [0, 64], sizes = [8, 32], strides = [1, 1]} : vector<8x96xf32> to vector<8x32xf32>
    %156 = vector.extract_strided_slice %145 {offsets = [0, 64], sizes = [8, 32], strides = [1, 1]} : vector<8x96xf32> to vector<8x32xf32>
    %157 = arith.mulf %153, %156 : vector<8x32xf32>
    %158 = arith.addf %155, %157 : vector<8x32xf32>
    %159 = math.tanh %158 : vector<8x32xf32>
    %cst_30 = arith.constant 1.000000e+00 : f32
    %160 = vector.broadcast %cst_30 : f32 to vector<8x32xf32>
    %161 = arith.subf %160, %154 : vector<8x32xf32>
    %162 = arith.mulf %161, %159 : vector<8x32xf32>
    %163 = arith.mulf %154, %142 : vector<8x32xf32>
    %164 = arith.addf %162, %163 : vector<8x32xf32>
    %165 = vector.extract_strided_slice %5 {offsets = [0, 0], sizes = [8, 96], strides = [1, 1]} : vector<64x96xf32> to vector<8x96xf32>
    %cst_31 = arith.constant dense<0.000000e+00> : vector<8x96xf32>
    %166 = tpu.matmul %164, %6, %cst_31 {dimension_numbers = #tpu.dot_dimension_numbers<[1], [0], [0], [1], [0, 0, 1, 1], [], []>} : vector<8x32xf32>, vector<32x96xf32>, vector<8x96xf32> -> vector<8x96xf32>
    %167 = arith.addf %166, %9 : vector<8x96xf32>
    %168 = arith.addf %165, %167 : vector<8x96xf32>
    %169 = vector.extract_strided_slice %168 {offsets = [0, 0], sizes = [8, 64], strides = [1, 1]} : vector<8x96xf32> to vector<8x64xf32>
    %170 = arith.negf %169 : vector<8x64xf32>
    %171 = math.exp %170 : vector<8x64xf32>
    %cst_32 = arith.constant 1.000000e+00 : f32
    %172 = vector.broadcast %cst_32 : f32 to vector<8x64xf32>
    %173 = arith.addf %172, %171 : vector<8x64xf32>
    %174 = arith.divf %172, %173 : vector<8x64xf32>
    %175 = vector.extract_strided_slice %174 {offsets = [0, 0], sizes = [8, 32], strides = [1, 1]} : vector<8x64xf32> to vector<8x32xf32>
    %176 = vector.extract_strided_slice %174 {offsets = [0, 32], sizes = [8, 32], strides = [1, 1]} : vector<8x64xf32> to vector<8x32xf32>
    %177 = vector.extract_strided_slice %165 {offsets = [0, 64], sizes = [8, 32], strides = [1, 1]} : vector<8x96xf32> to vector<8x32xf32>
    %178 = vector.extract_strided_slice %167 {offsets = [0, 64], sizes = [8, 32], strides = [1, 1]} : vector<8x96xf32> to vector<8x32xf32>
    %179 = arith.mulf %175, %178 : vector<8x32xf32>
    %180 = arith.addf %177, %179 : vector<8x32xf32>
    %181 = math.tanh %180 : vector<8x32xf32>
    %cst_33 = arith.constant 1.000000e+00 : f32
    %182 = vector.broadcast %cst_33 : f32 to vector<8x32xf32>
    %183 = arith.subf %182, %176 : vector<8x32xf32>
    %184 = arith.mulf %183, %181 : vector<8x32xf32>
    %185 = arith.mulf %176, %164 : vector<8x32xf32>
    %186 = arith.addf %184, %185 : vector<8x32xf32>
    %c0_34 = arith.constant 0 : index
    %c0_35 = arith.constant 0 : index
    %187 = vector.load %arg5[%c0_34, %c0_35] : memref<32x32xf32, #tpu.memory_space<vmem>>, vector<32x32xf32>
    %cst_36 = arith.constant dense<0.000000e+00> : vector<8x32xf32>
    %188 = tpu.matmul %186, %187, %cst_36 {dimension_numbers = #tpu.dot_dimension_numbers<[1], [0], [0], [1], [0, 0, 1, 1], [], []>} : vector<8x32xf32>, vector<32x32xf32>, vector<8x32xf32> -> vector<8x32xf32>
    %c0_37 = arith.constant 0 : index
    %c0_38 = arith.constant 0 : index
    %189 = vector.load %arg6[%c0_37, %c0_38] : memref<1x32xf32, #tpu.memory_space<vmem>>, vector<1x32xf32>
    %190 = vector.broadcast %189 : vector<1x32xf32> to vector<8x32xf32>
    %191 = arith.addf %188, %190 : vector<8x32xf32>
    %cst_39 = arith.constant 0.000000e+00 : f32
    %192 = vector.broadcast %cst_39 : f32 to vector<8x32xf32>
    %193 = arith.maximumf %191, %192 : vector<8x32xf32>
    %c0_40 = arith.constant 0 : index
    %c0_41 = arith.constant 0 : index
    %194 = vector.load %arg7[%c0_40, %c0_41] : memref<32x8xf32, #tpu.memory_space<vmem>>, vector<32x8xf32>
    %cst_42 = arith.constant dense<0.000000e+00> : vector<8x8xf32>
    %195 = tpu.matmul %193, %194, %cst_42 {dimension_numbers = #tpu.dot_dimension_numbers<[1], [0], [0], [1], [0, 0, 1, 1], [], []>} : vector<8x32xf32>, vector<32x8xf32>, vector<8x8xf32> -> vector<8x8xf32>
    %c0_43 = arith.constant 0 : index
    %c0_44 = arith.constant 0 : index
    %196 = vector.load %arg8[%c0_43, %c0_44] : memref<1x8xf32, #tpu.memory_space<vmem>>, vector<1x8xf32>
    %197 = vector.broadcast %196 : vector<1x8xf32> to vector<8x8xf32>
    %198 = arith.addf %195, %197 : vector<8x8xf32>
    %c0_45 = arith.constant 0 : index
    %c0_46 = arith.constant 0 : index
    %199 = vector.load %arg9[%c0_45, %c0_46] : memref<8x8xf32, #tpu.memory_space<vmem>>, vector<8x8xf32>
    tpu.vector_store %arg9[%c0_45, %c0_46], %198 {strides = array<i32>} : memref<8x8xf32, #tpu.memory_space<vmem>>, vector<8x8xf32>,
    return
  }
}

</mosaic_0001>

<llo_original>
// kernel: tpu_custom_call.1
$region0: #{tpu_custom_call.1}
  #allocation0 [shape = 'u32[]', space=smem, size = 0x4, offset = 0x4, fixed_abs, tag = 'smem constant byte address 0x4 - core index']
  #allocation1 [shape = 'u32[144,128]{1,0:T(1,128)}', space=vmem, size = 0x12000, scoped, tag = 'internal scratch']
  %s0 = inlined_call_operand.vmem [shape: f32[64,16], index: 0, kind: input, shape index: {}]
  %s1 = inlined_call_operand.vmem [shape: f32[16,96], index: 1, kind: input, shape index: {}]
  %s2 = inlined_call_operand.vmem [shape: f32[1,96], index: 2, kind: input, shape index: {}]
  %s3 = inlined_call_operand.vmem [shape: f32[32,96], index: 3, kind: input, shape index: {}]
  %s4 = inlined_call_operand.vmem [shape: f32[1,96], index: 4, kind: input, shape index: {}]
  %s5 = inlined_call_operand.vmem [shape: f32[32,32], index: 5, kind: input, shape index: {}]
  %s6 = inlined_call_operand.vmem [shape: f32[1,32], index: 6, kind: input, shape index: {}]
  %s7 = inlined_call_operand.vmem [shape: f32[32,8], index: 7, kind: input, shape index: {}]
  %s8 = inlined_call_operand.vmem [shape: f32[1,8], index: 8, kind: input, shape index: {}]
  %s9 = inlined_call_operand.hbm [shape: f32[8,8], index: 9, kind: output, shape index: {}]
  %s10 = sld [smem:[#allocation0]]
  $region46: #{tpu_custom_call.1} parent=0
    _
  %s12 = ssub.s32 1, %s10
  %s13 = scalar_select 0, %s12, %s10
  $region1: #{tpu_custom_call.1} parent=0
    #allocation2 [shape = 'u8[4096]{0}', space=vmem, size = 0x1000, scoped, tag = 'output window, operand 0, single buffered']
    #allocation3 [shape = 's32[1]{0}', space=sflag, size = 0x4, scoped, tag = 'scoped memory for tpu_custom_call.1']
    %14 = vsyncpa [#allocation3], 0
    // Predicated region
    $region2: #{tpu_custom_call.1} parent=1 // pred_check
      _
    $region3: #{tpu_custom_call.1} parent=1 // pred_check_branch
      %16 = sbr.rel (0) target = $region5
    $region4: #{tpu_custom_call.1} parent=1 // pred_region
      _
    $region5: #{tpu_custom_call.1} parent=1 // pred_fallthru
      _
    // Predicated region
    $region6: #{tpu_custom_call.1} parent=1 // pred_check
      _
    $region7: #{tpu_custom_call.1} parent=1 // pred_check_branch
      %18 = sbr.rel (0) target = $region9
    $region8: #{tpu_custom_call.1} parent=1 // pred_region
      _
    $region9: #{tpu_custom_call.1} parent=1 // pred_fallthru
      _
    // Predicated region
    $region10: #{tpu_custom_call.1} parent=1 // pred_check
      _
    $region11: #{tpu_custom_call.1} parent=1 // pred_check_branch
      %20 = sbr.rel (0) target = $region13
    $region12: #{tpu_custom_call.1} parent=1 // pred_region
      _
    $region13: #{tpu_custom_call.1} parent=1 // pred_fallthru
      _
    // Predicated region
    $region14: #{tpu_custom_call.1} parent=1 // pred_check
      _
    $region15: #{tpu_custom_call.1} parent=1 // pred_check_branch
      %22 = sbr.rel (0) target = $region17
    $region16: #{tpu_custom_call.1} parent=1 // pred_region
      _
    $region17: #{tpu_custom_call.1} parent=1 // pred_fallthru
      _
    // Predicated region
    $region18: #{tpu_custom_call.1} parent=1 // pred_check
      _
    $region19: #{tpu_custom_call.1} parent=1 // pred_check_branch
      %24 = sbr.rel (0) target = $region21
    $region20: #{tpu_custom_call.1} parent=1 // pred_region
      _
    $region21: #{tpu_custom_call.1} parent=1 // pred_fallthru
      _
    // Predicated region
    $region22: #{tpu_custom_call.1} parent=1 // pred_check
      _
    $region23: #{tpu_custom_call.1} parent=1 // pred_check_branch
      %26 = sbr.rel (0) target = $region25
    $region24: #{tpu_custom_call.1} parent=1 // pred_region
      _
    $region25: #{tpu_custom_call.1} parent=1 // pred_fallthru
      _
    // Predicated region
    $region26: #{tpu_custom_call.1} parent=1 // pred_check
      _
    $region27: #{tpu_custom_call.1} parent=1 // pred_check_branch
      %28 = sbr.rel (0) target = $region29
    $region28: #{tpu_custom_call.1} parent=1 // pred_region
      _
    $region29: #{tpu_custom_call.1} parent=1 // pred_fallthru
      _
    // Predicated region
    $region30: #{tpu_custom_call.1} parent=1 // pred_check
      _
    $region31: #{tpu_custom_call.1} parent=1 // pred_check_branch
      %30 = sbr.rel (0) target = $region33
    $region32: #{tpu_custom_call.1} parent=1 // pred_region
      _
    $region33: #{tpu_custom_call.1} parent=1 // pred_fallthru
      _
    // Predicated region
    $region34: #{tpu_custom_call.1} parent=1 // pred_check
      _
    $region35: #{tpu_custom_call.1} parent=1 // pred_check_branch
      %32 = sbr.rel (0) target = $region37
    $region36: #{tpu_custom_call.1} parent=1 // pred_region
      _
    $region37: #{tpu_custom_call.1} parent=1 // pred_fallthru
      _
    %v33 = vld [vmem:[%s0] sm:$0xff]
    %v34 = vld [vmem:[%s0 + $0x8] sm:$0xff]
    %v35 = vld [vmem:[%s0 + $0x10] sm:$0xff]
    %v36 = vld [vmem:[%s0 + $0x18] sm:$0xff]
    %v37 = vld [vmem:[%s0 + $0x20] sm:$0xff]
    %v38 = vld [vmem:[%s0 + $0x28] sm:$0xff]
    %v39 = vld [vmem:[%s0 + $0x30] sm:$0xff]
    %v40 = vld [vmem:[%s0 + $0x38] sm:$0xff]
    %v41 = vld [vmem:[%s1] sm:$0xff]
    %v42 = vld [vmem:[%s1 + $0x8] sm:$0xff]
    %v43 = vld [vmem:[%s2] sm:$0x1]
    %v45 = vlaneseq
    %v46 = vshrl.u32 %v45, 7
    %v47 = vsub.s32 0, %v46
    %v48 = vrot.slane %v43, %v47
    %vm50 = vcmask 130048
    %v52 = vsel %vm50, %v33, 0
    %v55 = vsel %vm50, %v34, 0
    %v58 = vsel %vm50, %v35, 0
    %v61 = vsel %vm50, %v36, 0
    %v64 = vsel %vm50, %v37, 0
    %v67 = vsel %vm50, %v38, 0
    %v70 = vsel %vm50, %v39, 0
    %v73 = vsel %vm50, %v40, 0
    %75 = vmatprep.subr.mxu0 0.0
    %76 = vmatpush1.msra.mxu0 %v41
    %77 = vmatprep.subr.mxu0 0.0
    %78 = vmatpush1.msra.mxu0 %v42
    %79 = vmatprep.subr.mxu0 0.0
    %80 = vmatpush1.msra.mxu0 0.0
    %81 = vmatprep.subr.mxu0 0.0
    %82 = vmatpush1.msra.mxu0 0.0
    %83 = vmatprep.subr.mxu0 0.0
    %84 = vmatpush1.msra.mxu0 0.0
    %85 = vmatprep.subr.mxu0 0.0
    %86 = vmatpush1.msra.mxu0 0.0
    %87 = vmatprep.subr.mxu0 0.0
    %88 = vmatpush1.msra.mxu0 0.0
    %89 = vmatprep.subr.mxu0 0.0
    %90 = vmatpush1.msra.mxu0 0.0
    %91 = vmatprep.subr.mxu0 0.0
    %92 = vmatpush1.msra.mxu0 0.0
    %93 = vmatprep.subr.mxu0 0.0
    %94 = vmatpush1.msra.mxu0 0.0
    %95 = vmatprep.subr.mxu0 0.0
    %96 = vmatpush1.msra.mxu0 0.0
    %97 = vmatprep.subr.mxu0 0.0
    %98 = vmatpush1.msra.mxu0 0.0
    %99 = vmatprep.subr.mxu0 0.0
    %100 = vmatpush1.msra.mxu0 0.0
    %101 = vmatprep.subr.mxu0 0.0
    %102 = vmatpush1.msra.mxu0 0.0
    %103 = vmatprep.subr.mxu0 0.0
    %104 = vmatpush1.msra.mxu0 0.0
    %105 = vmatprep.subr.mxu0 0.0
    %106 = vmatpush1.msra.mxu0 0.0
    %107 = vmatprep.subr.mxu0 0.0
    %108 = vmatpush1.msra.mxu0 0.0
    %109 = vmatprep.subr.mxu0 0.0
    %110 = vmatpush1.msra.mxu0 0.0
    %111 = vmatprep.subr.mxu0 0.0
    %112 = vmatpush1.msra.mxu0 0.0
    %113 = vmatprep.subr.mxu0 0.0
    %114 = vmatpush1.msra.mxu0 0.0
    %115 = vmatprep.subr.mxu0 0.0
    %116 = vmatpush1.msra.mxu0 0.0
    %117 = vmatprep.subr.mxu0 0.0
    %118 = vmatpush1.msra.mxu0 0.0
    %119 = vmatprep.subr.mxu0 0.0
    %120 = vmatpush1.msra.mxu0 0.0
    %121 = vmatprep.subr.mxu0 0.0
    %122 = vmatpush1.msra.mxu0 0.0
    %123 = vmatprep.subr.mxu0 0.0
    %124 = vmatpush1.msra.mxu0 0.0
    %125 = vmatprep.subr.mxu0 0.0
    %126 = vmatpush1.msra.mxu0 0.0
    %127 = vmatprep.subr.mxu0 0.0
    %128 = vmatpush1.msra.mxu0 0.0
    %129 = vmatprep.subr.mxu0 0.0
    %130 = vmatpush1.msra.mxu0 0.0
    %131 = vmatprep.subr.mxu0 0.0
    %132 = vmatpush1.msra.mxu0 0.0
    %133 = vmatprep.subr.mxu0 0.0
    %134 = vmatpush1.msra.mxu0 0.0
    %135 = vmatprep.subr.mxu0 0.0
    %136 = vmatpush1.msra.mxu0 0.0
    %137 = vmatprep.subr.mxu0 0.0
    %138 = vmatpush1.msra.mxu0 0.0
    %139 = vmatprep.mubr.f32.mxu0 0.0
    %140 = vmatmul.mubr.f32.gmra.mrb[0].mxu0 %v52
    %v141 = vpop.f32.mrb[0].mxu0
    %v142 = vadd.f32 %v48, %v141
    %v143 = vpop.f32.mrb[0].mxu0
    %144 = vmatprep.mubr.f32.mxu0 0.0
    %145 = vmatmul.mubr.f32.gmra.mrb[0].mxu0 %v55
    %v146 = vpop.f32.mrb[0].mxu0
    %v147 = vadd.f32 %v48, %v146
    %v148 = vpop.f32.mrb[0].mxu0
    %149 = vmatprep.mubr.f32.mxu0 0.0
    %150 = vmatmul.mubr.f32.gmra.mrb[0].mxu0 %v58
    %v151 = vpop.f32.mrb[0].mxu0
    %v152 = vadd.f32 %v48, %v151
    %v153 = vpop.f32.mrb[0].mxu0
    %154 = vmatprep.mubr.f32.mxu0 0.0
    %155 = vmatmul.mubr.f32.gmra.mrb[0].mxu0 %v61
    %v156 = vpop.f32.mrb[0].mxu0
    %v157 = vadd.f32 %v48, %v156
    %v158 = vpop.f32.mrb[0].mxu0
    %159 = vmatprep.mubr.f32.mxu0 0.0
    %160 = vmatmul.mubr.f32.gmra.mrb[0].mxu0 %v64
    %v161 = vpop.f32.mrb[0].mxu0
    %v162 = vadd.f32 %v48, %v161
    %v163 = vpop.f32.mrb[0].mxu0
    %164 = vmatprep.mubr.f32.mxu0 0.0
    %165 = vmatmul.mubr.f32.gmra.mrb[0].mxu0 %v67
    %v166 = vpop.f32.mrb[0].mxu0
    %v167 = vadd.f32 %v48, %v166
    %v168 = vpop.f32.mrb[0].mxu0
    %169 = vmatprep.mubr.f32.mxu0 0.0
    %170 = vmatmul.mubr.f32.gmra.mrb[0].mxu0 %v70
    %v171 = vpop.f32.mrb[0].mxu0
    %v172 = vadd.f32 %v48, %v171
    %v173 = vpop.f32.mrb[0].mxu0
    %174 = vmatprep.mubr.f32.mxu0 0.0
    %175 = vmatmul.mubr.f32.gmra.mrb[0].mxu0 %v73
    %v176 = vpop.f32.mrb[0].mxu0
    %v177 = vadd.f32 %v48, %v176
    %v178 = vpop.f32.mrb[0].mxu0
    %179 = vdwg.mxu0
    %v180 = vld [vmem:[%s3] sm:$0xff]
    %v181 = vld [vmem:[%s3 + $0x8] sm:$0xff]
    %v182 = vld [vmem:[%s3 + $0x10] sm:$0xff]
    %v183 = vld [vmem:[%s3 + $0x18] sm:$0xff]
    %v184 = vld [vmem:[%s4] sm:$0x1]
    %v186 = vlaneseq
    %v187 = vshrl.u32 %v186, 7
    %v188 = vsub.s32 0, %v187
    %v189 = vrot.slane %v184, %v188
    %vm191 = vcmask 261120
    %v193 = vsel %vm191, 0.0, 0
    %195 = vmatprep.subr.mxu0 0.0
    %196 = vmatpush1.msra.mxu0 %v180
    %197 = vmatprep.subr.mxu0 0.0
    %198 = vmatpush1.msra.mxu0 %v181
    %199 = vmatprep.subr.mxu0 0.0
    %200 = vmatpush1.msra.mxu0 %v182
    %201 = vmatprep.subr.mxu0 0.0
    %202 = vmatpush1.msra.mxu0 %v183
    %203 = vmatprep.subr.mxu0 0.0
    %204 = vmatpush1.msra.mxu0 0.0
    %205 = vmatprep.subr.mxu0 0.0
    %206 = vmatpush1.msra.mxu0 0.0
    %207 = vmatprep.subr.mxu0 0.0
    %208 = vmatpush1.msra.mxu0 0.0
    %209 = vmatprep.subr.mxu0 0.0
    %210 = vmatpush1.msra.mxu0 0.0
    %211 = vmatprep.subr.mxu0 0.0
    %212 = vmatpush1.msra.mxu0 0.0
    %213 = vmatprep.subr.mxu0 0.0
    %214 = vmatpush1.msra.mxu0 0.0
    %215 = vmatprep.subr.mxu0 0.0
    %216 = vmatpush1.msra.mxu0 0.0
    %217 = vmatprep.subr.mxu0 0.0
    %218 = vmatpush1.msra.mxu0 0.0
    %219 = vmatprep.subr.mxu0 0.0
    %220 = vmatpush1.msra.mxu0 0.0
    %221 = vmatprep.subr.mxu0 0.0
    %222 = vmatpush1.msra.mxu0 0.0
    %223 = vmatprep.subr.mxu0 0.0
    %224 = vmatpush1.msra.mxu0 0.0
    %225 = vmatprep.subr.mxu0 0.0
    %226 = vmatpush1.msra.mxu0 0.0
    %227 = vmatprep.subr.mxu0 0.0
    %228 = vmatpush1.msra.mxu0 0.0
    %229 = vmatprep.subr.mxu0 0.0
    %230 = vmatpush1.msra.mxu0 0.0
    %231 = vmatprep.subr.mxu0 0.0
    %232 = vmatpush1.msra.mxu0 0.0
    %233 = vmatprep.subr.mxu0 0.0
    %234 = vmatpush1.msra.mxu0 0.0
    %235 = vmatprep.subr.mxu0 0.0
    %236 = vmatpush1.msra.mxu0 0.0
    %237 = vmatprep.subr.mxu0 0.0
    %238 = vmatpush1.msra.mxu0 0.0
    %239 = vmatprep.subr.mxu0 0.0
    %240 = vmatpush1.msra.mxu0 0.0
    %241 = vmatprep.subr.mxu0 0.0
    %242 = vmatpush1.msra.mxu0 0.0
    %243 = vmatprep.subr.mxu0 0.0
    %244 = vmatpush1.msra.mxu0 0.0
    %245 = vmatprep.subr.mxu0 0.0
    %246 = vmatpush1.msra.mxu0 0.0
    %247 = vmatprep.subr.mxu0 0.0
    %248 = vmatpush1.msra.mxu0 0.0
    %249 = vmatprep.subr.mxu0 0.0
    %250 = vmatpush1.msra.mxu0 0.0
    %251 = vmatprep.subr.mxu0 0.0
    %252 = vmatpush1.msra.mxu0 0.0
    %253 = vmatprep.subr.mxu0 0.0
    %254 = vmatpush1.msra.mxu0 0.0
    %255 = vmatprep.subr.mxu0 0.0
    %256 = vmatpush1.msra.mxu0 0.0
    %257 = vmatprep.subr.mxu0 0.0
    %258 = vmatpush1.msra.mxu0 0.0
    %259 = vmatprep.mubr.f32.mxu0 0.0
    %260 = vmatmul.mubr.f32.gmra.mrb[0].mxu0 %v193
    %v261 = vpop.f32.mrb[0].mxu0
    %v262 = vadd.f32 %v189, %v261
    %v263 = vpop.f32.mrb[0].mxu0
    %264 = vdwg.mxu0
    %v265 = vadd.f32 %v177, %v262
    %v266 = vxor.u32 %v265, 2147483648
    %v267 = vmul.f32 %v266, 1.442695
    %v268 = vpow.pop %v267
    %v269 = vadd.f32 %v268, 1.0
    %v270 = vrcp.pop %v269
    %v271 = vmul.f32 1.0, %v270
    %273 = vrot.lane.b32.xlu0 %v262, 64
    %v274 = vpop.permute.xlu0 %273
    %v276 = vmul.f32 %v271, %v274
    %278 = vrot.lane.b32.xlu0 %v276, 64
    %v279 = vpop.permute.xlu0 %278
    %v281 = vadd.f32 %v177, %v279
    %v282 = vtanh.pop %v281
    %v283 = vsub.f32 1.0, %v271
    %285 = vrot.lane.b32.xlu0 %v282, 96
    %v286 = vpop.permute.xlu0 %285
    %v288 = vmul.f32 %v283, %v286
    %v289 = vmul.f32 %v271, 0.0
    %v290 = vadd.f32 %v288, %v289
    %292 = vrot.lane.b32.xlu0 %v290, 96
    %v293 = vpop.permute.xlu0 %292
    %v294 = vsel %vm191, %v293, 0
    %296 = vmatprep.subr.mxu0 0.0
    %297 = vmatpush1.msra.mxu0 %v180
    %298 = vmatprep.subr.mxu0 0.0
    %299 = vmatpush1.msra.mxu0 %v181
    %300 = vmatprep.subr.mxu0 0.0
    %301 = vmatpush1.msra.mxu0 %v182
    %302 = vmatprep.subr.mxu0 0.0
    %303 = vmatpush1.msra.mxu0 %v183
    %304 = vmatprep.subr.mxu0 0.0
    %305 = vmatpush1.msra.mxu0 0.0
    %306 = vmatprep.subr.mxu0 0.0
    %307 = vmatpush1.msra.mxu0 0.0
    %308 = vmatprep.subr.mxu0 0.0
    %309 = vmatpush1.msra.mxu0 0.0
    %310 = vmatprep.subr.mxu0 0.0
    %311 = vmatpush1.msra.mxu0 0.0
    %312 = vmatprep.subr.mxu0 0.0
    %313 = vmatpush1.msra.mxu0 0.0
    %314 = vmatprep.subr.mxu0 0.0
    %315 = vmatpush1.msra.mxu0 0.0
    %316 = vmatprep.subr.mxu0 0.0
    %317 = vmatpush1.msra.mxu0 0.0
    %318 = vmatprep.subr.mxu0 0.0
    %319 = vmatpush1.msra.mxu0 0.0
    %320 = vmatprep.subr.mxu0 0.0
    %321 = vmatpush1.msra.mxu0 0.0
    %322 = vmatprep.subr.mxu0 0.0
    %323 = vmatpush1.msra.mxu0 0.0
    %324 = vmatprep.subr.mxu0 0.0
    %325 = vmatpush1.msra.mxu0 0.0
    %326 = vmatprep.subr.mxu0 0.0
    %327 = vmatpush1.msra.mxu0 0.0
    %328 = vmatprep.subr.mxu0 0.0
    %329 = vmatpush1.msra.mxu0 0.0
    %330 = vmatprep.subr.mxu0 0.0
    %331 = vmatpush1.msra.mxu0 0.0
    %332 = vmatprep.subr.mxu0 0.0
    %333 = vmatpush1.msra.mxu0 0.0
    %334 = vmatprep.subr.mxu0 0.0
    %335 = vmatpush1.msra.mxu0 0.0
    %336 = vmatprep.subr.mxu0 0.0
    %337 = vmatpush1.msra.mxu0 0.0
    %338 = vmatprep.subr.mxu0 0.0
    %339 = vmatpush1.msra.mxu0 0.0
    %340 = vmatprep.subr.mxu0 0.0
    %341 = vmatpush1.msra.mxu0 0.0
    %342 = vmatprep.subr.mxu0 0.0
    %343 = vmatpush1.msra.mxu0 0.0
    %344 = vmatprep.subr.mxu0 0.0
    %345 = vmatpush1.msra.mxu0 0.0
    %346 = vmatprep.subr.mxu0 0.0
    %347 = vmatpush1.msra.mxu0 0.0
    %348 = vmatprep.subr.mxu0 0.0
    %349 = vmatpush1.msra.mxu0 0.0
    %350 = vmatprep.subr.mxu0 0.0
    %351 = vmatpush1.msra.mxu0 0.0
    %352 = vmatprep.subr.mxu0 0.0
    %353 = vmatpush1.msra.mxu0 0.0
    %354 = vmatprep.subr.mxu0 0.0
    %355 = vmatpush1.msra.mxu0 0.0
    %356 = vmatprep.subr.mxu0 0.0
    %357 = vmatpush1.msra.mxu0 0.0
    %358 = vmatprep.subr.mxu0 0.0
    %359 = vmatpush1.msra.mxu0 0.0
    %360 = vmatprep.mubr.f32.mxu0 0.0
    %361 = vmatmul.mubr.f32.gmra.mrb[0].mxu0 %v294
    %v362 = vpop.f32.mrb[0].mxu0
    %v363 = vadd.f32 %v189, %v362
    %v364 = vpop.f32.mrb[0].mxu0
    %365 = vdwg.mxu0
    %v366 = vadd.f32 %v172, %v363
    %v367 = vxor.u32 %v366, 2147483648
    %v368 = vmul.f32 %v367, 1.442695
    %v369 = vpow.pop %v368
    %v370 = vadd.f32 %v369, 1.0
    %v371 = vrcp.pop %v370
    %v372 = vmul.f32 1.0, %v371
    %374 = vrot.lane.b32.xlu0 %v363, 64
    %v375 = vpop.permute.xlu0 %374
    %v377 = vmul.f32 %v372, %v375
    %379 = vrot.lane.b32.xlu0 %v377, 64
    %v380 = vpop.permute.xlu0 %379
    %v382 = vadd.f32 %v172, %v380
    %v383 = vtanh.pop %v382
    %v384 = vsub.f32 1.0, %v372
    %386 = vrot.lane.b32.xlu0 %v383, 96
    %v387 = vpop.permute.xlu0 %386
    %v389 = vmul.f32 %v384, %v387
    %v390 = vmul.f32 %v372, %v290
    %v391 = vadd.f32 %v389, %v390
    %393 = vrot.lane.b32.xlu0 %v391, 96
    %v394 = vpop.permute.xlu0 %393
    %v395 = vsel %vm191, %v394, 0
    %397 = vmatprep.subr.mxu0 0.0
    %398 = vmatpush1.msra.mxu0 %v180
    %399 = vmatprep.subr.mxu0 0.0
    %400 = vmatpush1.msra.mxu0 %v181
    %401 = vmatprep.subr.mxu0 0.0
    %402 = vmatpush1.msra.mxu0 %v182
    %403 = vmatprep.subr.mxu0 0.0
    %404 = vmatpush1.msra.mxu0 %v183
    %405 = vmatprep.subr.mxu0 0.0
    %406 = vmatpush1.msra.mxu0 0.0
    %407 = vmatprep.subr.mxu0 0.0
    %408 = vmatpush1.msra.mxu0 0.0
    %409 = vmatprep.subr.mxu0 0.0
    %410 = vmatpush1.msra.mxu0 0.0
    %411 = vmatprep.subr.mxu0 0.0
    %412 = vmatpush1.msra.mxu0 0.0
    %413 = vmatprep.subr.mxu0 0.0
    %414 = vmatpush1.msra.mxu0 0.0
    %415 = vmatprep.subr.mxu0 0.0
    %416 = vmatpush1.msra.mxu0 0.0
    %417 = vmatprep.subr.mxu0 0.0
    %418 = vmatpush1.msra.mxu0 0.0
    %419 = vmatprep.subr.mxu0 0.0
    %420 = vmatpush1.msra.mxu0 0.0
    %421 = vmatprep.subr.mxu0 0.0
    %422 = vmatpush1.msra.mxu0 0.0
    %423 = vmatprep.subr.mxu0 0.0
    %424 = vmatpush1.msra.mxu0 0.0
    %425 = vmatprep.subr.mxu0 0.0
    %426 = vmatpush1.msra.mxu0 0.0
    %427 = vmatprep.subr.mxu0 0.0
    %428 = vmatpush1.msra.mxu0 0.0
    %429 = vmatprep.subr.mxu0 0.0
    %430 = vmatpush1.msra.mxu0 0.0
    %431 = vmatprep.subr.mxu0 0.0
    %432 = vmatpush1.msra.mxu0 0.0
    %433 = vmatprep.subr.mxu0 0.0
    %434 = vmatpush1.msra.mxu0 0.0
    %435 = vmatprep.subr.mxu0 0.0
    %436 = vmatpush1.msra.mxu0 0.0
    %437 = vmatprep.subr.mxu0 0.0
    %438 = vmatpush1.msra.mxu0 0.0
    %439 = vmatprep.subr.mxu0 0.0
    %440 = vmatpush1.msra.mxu0 0.0
    %441 = vmatprep.subr.mxu0 0.0
    %442 = vmatpush1.msra.mxu0 0.0
    %443 = vmatprep.subr.mxu0 0.0
    %444 = vmatpush1.msra.mxu0 0.0
    %445 = vmatprep.subr.mxu0 0.0
    %446 = vmatpush1.msra.mxu0 0.0
    %447 = vmatprep.subr.mxu0 0.0
    %448 = vmatpush1.msra.mxu0 0.0
    %449 = vmatprep.subr.mxu0 0.0
    %450 = vmatpush1.msra.mxu0 0.0
    %451 = vmatprep.subr.mxu0 0.0
    %452 = vmatpush1.msra.mxu0 0.0
    %453 = vmatprep.subr.mxu0 0.0
    %454 = vmatpush1.msra.mxu0 0.0
    %455 = vmatprep.subr.mxu0 0.0
    %456 = vmatpush1.msra.mxu0 0.0
    %457 = vmatprep.subr.mxu0 0.0
    %458 = vmatpush1.msra.mxu0 0.0
    %459 = vmatprep.subr.mxu0 0.0
    %460 = vmatpush1.msra.mxu0 0.0
    %461 = vmatprep.mubr.f32.mxu0 0.0
    %462 = vmatmul.mubr.f32.gmra.mrb[0].mxu0 %v395
    %v463 = vpop.f32.mrb[0].mxu0
    %v464 = vadd.f32 %v189, %v463
    %v465 = vpop.f32.mrb[0].mxu0
    %466 = vdwg.mxu0
    %v467 = vadd.f32 %v167, %v464
    %v468 = vxor.u32 %v467, 2147483648
    %v469 = vmul.f32 %v468, 1.442695
    %v470 = vpow.pop %v469
    %v471 = vadd.f32 %v470, 1.0
    %v472 = vrcp.pop %v471
    %v473 = vmul.f32 1.0, %v472
    %475 = vrot.lane.b32.xlu0 %v464, 64
    %v476 = vpop.permute.xlu0 %475
    %v478 = vmul.f32 %v473, %v476
    %480 = vrot.lane.b32.xlu0 %v478, 64
    %v481 = vpop.permute.xlu0 %480
    %v483 = vadd.f32 %v167, %v481
    %v484 = vtanh.pop %v483
    %v485 = vsub.f32 1.0, %v473
    %487 = vrot.lane.b32.xlu0 %v484, 96
    %v488 = vpop.permute.xlu0 %487
    %v490 = vmul.f32 %v485, %v488
    %v491 = vmul.f32 %v473, %v391
    %v492 = vadd.f32 %v490, %v491
    %494 = vrot.lane.b32.xlu0 %v492, 96
    %v495 = vpop.permute.xlu0 %494
    %v496 = vsel %vm191, %v495, 0
    %498 = vmatprep.subr.mxu0 0.0
    %499 = vmatpush1.msra.mxu0 %v180
    %500 = vmatprep.subr.mxu0 0.0
    %501 = vmatpush1.msra.mxu0 %v181
    %502 = vmatprep.subr.mxu0 0.0
    %503 = vmatpush1.msra.mxu0 %v182
    %504 = vmatprep.subr.mxu0 0.0
    %505 = vmatpush1.msra.mxu0 %v183
    %506 = vmatprep.subr.mxu0 0.0
    %507 = vmatpush1.msra.mxu0 0.0
    %508 = vmatprep.subr.mxu0 0.0
    %509 = vmatpush1.msra.mxu0 0.0
    %510 = vmatprep.subr.mxu0 0.0
    %511 = vmatpush1.msra.mxu0 0.0
    %512 = vmatprep.subr.mxu0 0.0
    %513 = vmatpush1.msra.mxu0 0.0
    %514 = vmatprep.subr.mxu0 0.0
    %515 = vmatpush1.msra.mxu0 0.0
    %516 = vmatprep.subr.mxu0 0.0
    %517 = vmatpush1.msra.mxu0 0.0
    %518 = vmatprep.subr.mxu0 0.0
    %519 = vmatpush1.msra.mxu0 0.0
    %520 = vmatprep.subr.mxu0 0.0
    %521 = vmatpush1.msra.mxu0 0.0
    %522 = vmatprep.subr.mxu0 0.0
    %523 = vmatpush1.msra.mxu0 0.0
    %524 = vmatprep.subr.mxu0 0.0
    %525 = vmatpush1.msra.mxu0 0.0
    %526 = vmatprep.subr.mxu0 0.0
    %527 = vmatpush1.msra.mxu0 0.0
    %528 = vmatprep.subr.mxu0 0.0
    %529 = vmatpush1.msra.mxu0 0.0
    %530 = vmatprep.subr.mxu0 0.0
    %531 = vmatpush1.msra.mxu0 0.0
    %532 = vmatprep.subr.mxu0 0.0
    %533 = vmatpush1.msra.mxu0 0.0
    %534 = vmatprep.subr.mxu0 0.0
    %535 = vmatpush1.msra.mxu0 0.0
    %536 = vmatprep.subr.mxu0 0.0
    %537 = vmatpush1.msra.mxu0 0.0
    %538 = vmatprep.subr.mxu0 0.0
    %539 = vmatpush1.msra.mxu0 0.0
    %540 = vmatprep.subr.mxu0 0.0
    %541 = vmatpush1.msra.mxu0 0.0
    %542 = vmatprep.subr.mxu0 0.0
    %543 = vmatpush1.msra.mxu0 0.0
    %544 = vmatprep.subr.mxu0 0.0
    %545 = vmatpush1.msra.mxu0 0.0
    %546 = vmatprep.subr.mxu0 0.0
    %547 = vmatpush1.msra.mxu0 0.0
    %548 = vmatprep.subr.mxu0 0.0
    %549 = vmatpush1.msra.mxu0 0.0
    %550 = vmatprep.subr.mxu0 0.0
    %551 = vmatpush1.msra.mxu0 0.0
    %552 = vmatprep.subr.mxu0 0.0
    %553 = vmatpush1.msra.mxu0 0.0
    %554 = vmatprep.subr.mxu0 0.0
    %555 = vmatpush1.msra.mxu0 0.0
    %556 = vmatprep.subr.mxu0 0.0
    %557 = vmatpush1.msra.mxu0 0.0
    %558 = vmatprep.subr.mxu0 0.0
    %559 = vmatpush1.msra.mxu0 0.0
    %560 = vmatprep.subr.mxu0 0.0
    %561 = vmatpush1.msra.mxu0 0.0
    %562 = vmatprep.mubr.f32.mxu0 0.0
    %563 = vmatmul.mubr.f32.gmra.mrb[0].mxu0 %v496
    %v564 = vpop.f32.mrb[0].mxu0
    %v565 = vadd.f32 %v189, %v564
    %v566 = vpop.f32.mrb[0].mxu0
    %567 = vdwg.mxu0
    %v568 = vadd.f32 %v162, %v565
    %v569 = vxor.u32 %v568, 2147483648
    %v570 = vmul.f32 %v569, 1.442695
    %v571 = vpow.pop %v570
    %v572 = vadd.f32 %v571, 1.0
    %v573 = vrcp.pop %v572
    %v574 = vmul.f32 1.0, %v573
    %576 = vrot.lane.b32.xlu0 %v565, 64
    %v577 = vpop.permute.xlu0 %576
    %v579 = vmul.f32 %v574, %v577
    %581 = vrot.lane.b32.xlu0 %v579, 64
    %v582 = vpop.permute.xlu0 %581
    %v584 = vadd.f32 %v162, %v582
    %v585 = vtanh.pop %v584
    %v586 = vsub.f32 1.0, %v574
    %588 = vrot.lane.b32.xlu0 %v585, 96
    %v589 = vpop.permute.xlu0 %588
    %v591 = vmul.f32 %v586, %v589
    %v592 = vmul.f32 %v574, %v492
    %v593 = vadd.f32 %v591, %v592
    %595 = vrot.lane.b32.xlu0 %v593, 96
    %v596 = vpop.permute.xlu0 %595
    %v597 = vsel %vm191, %v596, 0
    %599 = vmatprep.subr.mxu0 0.0
    %600 = vmatpush1.msra.mxu0 %v180
    %601 = vmatprep.subr.mxu0 0.0
    %602 = vmatpush1.msra.mxu0 %v181
    %603 = vmatprep.subr.mxu0 0.0
    %604 = vmatpush1.msra.mxu0 %v182
    %605 = vmatprep.subr.mxu0 0.0
    %606 = vmatpush1.msra.mxu0 %v183
    %607 = vmatprep.subr.mxu0 0.0
    %608 = vmatpush1.msra.mxu0 0.0
    %609 = vmatprep.subr.mxu0 0.0
    %610 = vmatpush1.msra.mxu0 0.0
    %611 = vmatprep.subr.mxu0 0.0
    %612 = vmatpush1.msra.mxu0 0.0
    %613 = vmatprep.subr.mxu0 0.0
    %614 = vmatpush1.msra.mxu0 0.0
    %615 = vmatprep.subr.mxu0 0.0
    %616 = vmatpush1.msra.mxu0 0.0
    %617 = vmatprep.subr.mxu0 0.0
    %618 = vmatpush1.msra.mxu0 0.0
    %619 = vmatprep.subr.mxu0 0.0
    %620 = vmatpush1.msra.mxu0 0.0
    %621 = vmatprep.subr.mxu0 0.0
    %622 = vmatpush1.msra.mxu0 0.0
    %623 = vmatprep.subr.mxu0 0.0
    %624 = vmatpush1.msra.mxu0 0.0
    %625 = vmatprep.subr.mxu0 0.0
    %626 = vmatpush1.msra.mxu0 0.0
    %627 = vmatprep.subr.mxu0 0.0
    %628 = vmatpush1.msra.mxu0 0.0
    %629 = vmatprep.subr.mxu0 0.0
    %630 = vmatpush1.msra.mxu0 0.0
    %631 = vmatprep.subr.mxu0 0.0
    %632 = vmatpush1.msra.mxu0 0.0
    %633 = vmatprep.subr.mxu0 0.0
    %634 = vmatpush1.msra.mxu0 0.0
    %635 = vmatprep.subr.mxu0 0.0
    %636 = vmatpush1.msra.mxu0 0.0
    %637 = vmatprep.subr.mxu0 0.0
    %638 = vmatpush1.msra.mxu0 0.0
    %639 = vmatprep.subr.mxu0 0.0
    %640 = vmatpush1.msra.mxu0 0.0
    %641 = vmatprep.subr.mxu0 0.0
    %642 = vmatpush1.msra.mxu0 0.0
    %643 = vmatprep.subr.mxu0 0.0
    %644 = vmatpush1.msra.mxu0 0.0
    %645 = vmatprep.subr.mxu0 0.0
    %646 = vmatpush1.msra.mxu0 0.0
    %647 = vmatprep.subr.mxu0 0.0
    %648 = vmatpush1.msra.mxu0 0.0
    %649 = vmatprep.subr.mxu0 0.0
    %650 = vmatpush1.msra.mxu0 0.0
    %651 = vmatprep.subr.mxu0 0.0
    %652 = vmatpush1.msra.mxu0 0.0
    %653 = vmatprep.subr.mxu0 0.0
    %654 = vmatpush1.msra.mxu0 0.0
    %655 = vmatprep.subr.mxu0 0.0
    %656 = vmatpush1.msra.mxu0 0.0
    %657 = vmatprep.subr.mxu0 0.0
    %658 = vmatpush1.msra.mxu0 0.0
    %659 = vmatprep.subr.mxu0 0.0
    %660 = vmatpush1.msra.mxu0 0.0
    %661 = vmatprep.subr.mxu0 0.0
    %662 = vmatpush1.msra.mxu0 0.0
    %663 = vmatprep.mubr.f32.mxu0 0.0
    %664 = vmatmul.mubr.f32.gmra.mrb[0].mxu0 %v597
    %v665 = vpop.f32.mrb[0].mxu0
    %v666 = vadd.f32 %v189, %v665
    %v667 = vpop.f32.mrb[0].mxu0
    %668 = vdwg.mxu0
    %v669 = vadd.f32 %v157, %v666
    %v670 = vxor.u32 %v669, 2147483648
    %v671 = vmul.f32 %v670, 1.442695
    %v672 = vpow.pop %v671
    %v673 = vadd.f32 %v672, 1.0
    %v674 = vrcp.pop %v673
    %v675 = vmul.f32 1.0, %v674
    %677 = vrot.lane.b32.xlu0 %v666, 64
    %v678 = vpop.permute.xlu0 %677
    %v680 = vmul.f32 %v675, %v678
    %682 = vrot.lane.b32.xlu0 %v680, 64
    %v683 = vpop.permute.xlu0 %682
    %v685 = vadd.f32 %v157, %v683
    %v686 = vtanh.pop %v685
    %v687 = vsub.f32 1.0, %v675
    %689 = vrot.lane.b32.xlu0 %v686, 96
    %v690 = vpop.permute.xlu0 %689
    %v692 = vmul.f32 %v687, %v690
    %v693 = vmul.f32 %v675, %v593
    %v694 = vadd.f32 %v692, %v693
    %696 = vrot.lane.b32.xlu0 %v694, 96
    %v697 = vpop.permute.xlu0 %696
    %v698 = vsel %vm191, %v697, 0
    %700 = vmatprep.subr.mxu0 0.0
    %701 = vmatpush1.msra.mxu0 %v180
    %702 = vmatprep.subr.mxu0 0.0
    %703 = vmatpush1.msra.mxu0 %v181
    %704 = vmatprep.subr.mxu0 0.0
    %705 = vmatpush1.msra.mxu0 %v182
    %706 = vmatprep.subr.mxu0 0.0
    %707 = vmatpush1.msra.mxu0 %v183
    %708 = vmatprep.subr.mxu0 0.0
    %709 = vmatpush1.msra.mxu0 0.0
    %710 = vmatprep.subr.mxu0 0.0
    %711 = vmatpush1.msra.mxu0 0.0
    %712 = vmatprep.subr.mxu0 0.0
    %713 = vmatpush1.msra.mxu0 0.0
    %714 = vmatprep.subr.mxu0 0.0
    %715 = vmatpush1.msra.mxu0 0.0
    %716 = vmatprep.subr.mxu0 0.0
    %717 = vmatpush1.msra.mxu0 0.0
    %718 = vmatprep.subr.mxu0 0.0
    %719 = vmatpush1.msra.mxu0 0.0
    %720 = vmatprep.subr.mxu0 0.0
    %721 = vmatpush1.msra.mxu0 0.0
    %722 = vmatprep.subr.mxu0 0.0
    %723 = vmatpush1.msra.mxu0 0.0
    %724 = vmatprep.subr.mxu0 0.0
    %725 = vmatpush1.msra.mxu0 0.0
    %726 = vmatprep.subr.mxu0 0.0
    %727 = vmatpush1.msra.mxu0 0.0
    %728 = vmatprep.subr.mxu0 0.0
    %729 = vmatpush1.msra.mxu0 0.0
    %730 = vmatprep.subr.mxu0 0.0
    %731 = vmatpush1.msra.mxu0 0.0
    %732 = vmatprep.subr.mxu0 0.0
    %733 = vmatpush1.msra.mxu0 0.0
    %734 = vmatprep.subr.mxu0 0.0
    %735 = vmatpush1.msra.mxu0 0.0
    %736 = vmatprep.subr.mxu0 0.0
    %737 = vmatpush1.msra.mxu0 0.0
    %738 = vmatprep.subr.mxu0 0.0
    %739 = vmatpush1.msra.mxu0 0.0
    %740 = vmatprep.subr.mxu0 0.0
    %741 = vmatpush1.msra.mxu0 0.0
    %742 = vmatprep.subr.mxu0 0.0
    %743 = vmatpush1.msra.mxu0 0.0
    %744 = vmatprep.subr.mxu0 0.0
    %745 = vmatpush1.msra.mxu0 0.0
    %746 = vmatprep.subr.mxu0 0.0
    %747 = vmatpush1.msra.mxu0 0.0
    %748 = vmatprep.subr.mxu0 0.0
    %749 = vmatpush1.msra.mxu0 0.0
    %750 = vmatprep.subr.mxu0 0.0
    %751 = vmatpush1.msra.mxu0 0.0
    %752 = vmatprep.subr.mxu0 0.0
    %753 = vmatpush1.msra.mxu0 0.0
    %754 = vmatprep.subr.mxu0 0.0
    %755 = vmatpush1.msra.mxu0 0.0
    %756 = vmatprep.subr.mxu0 0.0
    %757 = vmatpush1.msra.mxu0 0.0
    %758 = vmatprep.subr.mxu0 0.0
    %759 = vmatpush1.msra.mxu0 0.0
    %760 = vmatprep.subr.mxu0 0.0
    %761 = vmatpush1.msra.mxu0 0.0
    %762 = vmatprep.subr.mxu0 0.0
    %763 = vmatpush1.msra.mxu0 0.0
    %764 = vmatprep.mubr.f32.mxu0 0.0
    %765 = vmatmul.mubr.f32.gmra.mrb[0].mxu0 %v698
    %v766 = vpop.f32.mrb[0].mxu0
    %v767 = vadd.f32 %v189, %v766
    %v768 = vpop.f32.mrb[0].mxu0
    %769 = vdwg.mxu0
    %v770 = vadd.f32 %v152, %v767
    %v771 = vxor.u32 %v770, 2147483648
    %v772 = vmul.f32 %v771, 1.442695
    %v773 = vpow.pop %v772
    %v774 = vadd.f32 %v773, 1.0
    %v775 = vrcp.pop %v774
    %v776 = vmul.f32 1.0, %v775
    %778 = vrot.lane.b32.xlu0 %v767, 64
    %v779 = vpop.permute.xlu0 %778
    %v781 = vmul.f32 %v776, %v779
    %783 = vrot.lane.b32.xlu0 %v781, 64
    %v784 = vpop.permute.xlu0 %783
    %v786 = vadd.f32 %v152, %v784
    %v787 = vtanh.pop %v786
    %v788 = vsub.f32 1.0, %v776
    %790 = vrot.lane.b32.xlu0 %v787, 96
    %v791 = vpop.permute.xlu0 %790
    %v793 = vmul.f32 %v788, %v791
    %v794 = vmul.f32 %v776, %v694
    %v795 = vadd.f32 %v793, %v794
    %797 = vrot.lane.b32.xlu0 %v795, 96
    %v798 = vpop.permute.xlu0 %797
    %v799 = vsel %vm191, %v798, 0
    %801 = vmatprep.subr.mxu0 0.0
    %802 = vmatpush1.msra.mxu0 %v180
    %803 = vmatprep.subr.mxu0 0.0
    %804 = vmatpush1.msra.mxu0 %v181
    %805 = vmatprep.subr.mxu0 0.0
    %806 = vmatpush1.msra.mxu0 %v182
    %807 = vmatprep.subr.mxu0 0.0
    %808 = vmatpush1.msra.mxu0 %v183
    %809 = vmatprep.subr.mxu0 0.0
    %810 = vmatpush1.msra.mxu0 0.0
    %811 = vmatprep.subr.mxu0 0.0
    %812 = vmatpush1.msra.mxu0 0.0
    %813 = vmatprep.subr.mxu0 0.0
    %814 = vmatpush1.msra.mxu0 0.0
    %815 = vmatprep.subr.mxu0 0.0
    %816 = vmatpush1.msra.mxu0 0.0
    %817 = vmatprep.subr.mxu0 0.0
    %818 = vmatpush1.msra.mxu0 0.0
    %819 = vmatprep.subr.mxu0 0.0
    %820 = vmatpush1.msra.mxu0 0.0
    %821 = vmatprep.subr.mxu0 0.0
    %822 = vmatpush1.msra.mxu0 0.0
    %823 = vmatprep.subr.mxu0 0.0
    %824 = vmatpush1.msra.mxu0 0.0
    %825 = vmatprep.subr.mxu0 0.0
    %826 = vmatpush1.msra.mxu0 0.0
    %827 = vmatprep.subr.mxu0 0.0
    %828 = vmatpush1.msra.mxu0 0.0
    %829 = vmatprep.subr.mxu0 0.0
    %830 = vmatpush1.msra.mxu0 0.0
    %831 = vmatprep.subr.mxu0 0.0
    %832 = vmatpush1.msra.mxu0 0.0
    %833 = vmatprep.subr.mxu0 0.0
    %834 = vmatpush1.msra.mxu0 0.0
    %835 = vmatprep.subr.mxu0 0.0
    %836 = vmatpush1.msra.mxu0 0.0
    %837 = vmatprep.subr.mxu0 0.0
    %838 = vmatpush1.msra.mxu0 0.0
    %839 = vmatprep.subr.mxu0 0.0
    %840 = vmatpush1.msra.mxu0 0.0
    %841 = vmatprep.subr.mxu0 0.0
    %842 = vmatpush1.msra.mxu0 0.0
    %843 = vmatprep.subr.mxu0 0.0
    %844 = vmatpush1.msra.mxu0 0.0
    %845 = vmatprep.subr.mxu0 0.0
    %846 = vmatpush1.msra.mxu0 0.0
    %847 = vmatprep.subr.mxu0 0.0
    %848 = vmatpush1.msra.mxu0 0.0
    %849 = vmatprep.subr.mxu0 0.0
    %850 = vmatpush1.msra.mxu0 0.0
    %851 = vmatprep.subr.mxu0 0.0
    %852 = vmatpush1.msra.mxu0 0.0
    %853 = vmatprep.subr.mxu0 0.0
    %854 = vmatpush1.msra.mxu0 0.0
    %855 = vmatprep.subr.mxu0 0.0
    %856 = vmatpush1.msra.mxu0 0.0
    %857 = vmatprep.subr.mxu0 0.0
    %858 = vmatpush1.msra.mxu0 0.0
    %859 = vmatprep.subr.mxu0 0.0
    %860 = vmatpush1.msra.mxu0 0.0
    %861 = vmatprep.subr.mxu0 0.0
    %862 = vmatpush1.msra.mxu0 0.0
    %863 = vmatprep.subr.mxu0 0.0
    %864 = vmatpush1.msra.mxu0 0.0
    %865 = vmatprep.mubr.f32.mxu0 0.0
    %866 = vmatmul.mubr.f32.gmra.mrb[0].mxu0 %v799
    %v867 = vpop.f32.mrb[0].mxu0
    %v868 = vadd.f32 %v189, %v867
    %v869 = vpop.f32.mrb[0].mxu0
    %870 = vdwg.mxu0
    %v871 = vadd.f32 %v147, %v868
    %v872 = vxor.u32 %v871, 2147483648
    %v873 = vmul.f32 %v872, 1.442695
    %v874 = vpow.pop %v873
    %v875 = vadd.f32 %v874, 1.0
    %v876 = vrcp.pop %v875
    %v877 = vmul.f32 1.0, %v876
    %879 = vrot.lane.b32.xlu0 %v868, 64
    %v880 = vpop.permute.xlu0 %879
    %v882 = vmul.f32 %v877, %v880
    %884 = vrot.lane.b32.xlu0 %v882, 64
    %v885 = vpop.permute.xlu0 %884
    %v887 = vadd.f32 %v147, %v885
    %v888 = vtanh.pop %v887
    %v889 = vsub.f32 1.0, %v877
    %891 = vrot.lane.b32.xlu0 %v888, 96
    %v892 = vpop.permute.xlu0 %891
    %v894 = vmul.f32 %v889, %v892
    %v895 = vmul.f32 %v877, %v795
    %v896 = vadd.f32 %v894, %v895
    %898 = vrot.lane.b32.xlu0 %v896, 96
    %v899 = vpop.permute.xlu0 %898
    %v900 = vsel %vm191, %v899, 0
    %902 = vmatprep.subr.mxu0 0.0
    %903 = vmatpush1.msra.mxu0 %v180
    %904 = vmatprep.subr.mxu0 0.0
    %905 = vmatpush1.msra.mxu0 %v181
    %906 = vmatprep.subr.mxu0 0.0
    %907 = vmatpush1.msra.mxu0 %v182
    %908 = vmatprep.subr.mxu0 0.0
    %909 = vmatpush1.msra.mxu0 %v183
    %910 = vmatprep.subr.mxu0 0.0
    %911 = vmatpush1.msra.mxu0 0.0
    %912 = vmatprep.subr.mxu0 0.0
    %913 = vmatpush1.msra.mxu0 0.0
    %914 = vmatprep.subr.mxu0 0.0
    %915 = vmatpush1.msra.mxu0 0.0
    %916 = vmatprep.subr.mxu0 0.0
    %917 = vmatpush1.msra.mxu0 0.0
    %918 = vmatprep.subr.mxu0 0.0
    %919 = vmatpush1.msra.mxu0 0.0
    %920 = vmatprep.subr.mxu0 0.0
    %921 = vmatpush1.msra.mxu0 0.0
    %922 = vmatprep.subr.mxu0 0.0
    %923 = vmatpush1.msra.mxu0 0.0
    %924 = vmatprep.subr.mxu0 0.0
    %925 = vmatpush1.msra.mxu0 0.0
    %926 = vmatprep.subr.mxu0 0.0
    %927 = vmatpush1.msra.mxu0 0.0
    %928 = vmatprep.subr.mxu0 0.0
    %929 = vmatpush1.msra.mxu0 0.0
    %930 = vmatprep.subr.mxu0 0.0
    %931 = vmatpush1.msra.mxu0 0.0
    %932 = vmatprep.subr.mxu0 0.0
    %933 = vmatpush1.msra.mxu0 0.0
    %934 = vmatprep.subr.mxu0 0.0
    %935 = vmatpush1.msra.mxu0 0.0
    %936 = vmatprep.subr.mxu0 0.0
    %937 = vmatpush1.msra.mxu0 0.0
    %938 = vmatprep.subr.mxu0 0.0
    %939 = vmatpush1.msra.mxu0 0.0
    %940 = vmatprep.subr.mxu0 0.0
    %941 = vmatpush1.msra.mxu0 0.0
    %942 = vmatprep.subr.mxu0 0.0
    %943 = vmatpush1.msra.mxu0 0.0
    %944 = vmatprep.subr.mxu0 0.0
    %945 = vmatpush1.msra.mxu0 0.0
    %946 = vmatprep.subr.mxu0 0.0
    %947 = vmatpush1.msra.mxu0 0.0
    %948 = vmatprep.subr.mxu0 0.0
    %949 = vmatpush1.msra.mxu0 0.0
    %950 = vmatprep.subr.mxu0 0.0
    %951 = vmatpush1.msra.mxu0 0.0
    %952 = vmatprep.subr.mxu0 0.0
    %953 = vmatpush1.msra.mxu0 0.0
    %954 = vmatprep.subr.mxu0 0.0
    %955 = vmatpush1.msra.mxu0 0.0
    %956 = vmatprep.subr.mxu0 0.0
    %957 = vmatpush1.msra.mxu0 0.0
    %958 = vmatprep.subr.mxu0 0.0
    %959 = vmatpush1.msra.mxu0 0.0
    %960 = vmatprep.subr.mxu0 0.0
    %961 = vmatpush1.msra.mxu0 0.0
    %962 = vmatprep.subr.mxu0 0.0
    %963 = vmatpush1.msra.mxu0 0.0
    %964 = vmatprep.subr.mxu0 0.0
    %965 = vmatpush1.msra.mxu0 0.0
    %966 = vmatprep.mubr.f32.mxu0 0.0
    %967 = vmatmul.mubr.f32.gmra.mrb[0].mxu0 %v900
    %v968 = vpop.f32.mrb[0].mxu0
    %v969 = vadd.f32 %v189, %v968
    %v970 = vpop.f32.mrb[0].mxu0
    %971 = vdwg.mxu0
    %v972 = vadd.f32 %v142, %v969
    %v973 = vxor.u32 %v972, 2147483648
    %v974 = vmul.f32 %v973, 1.442695
    %v975 = vpow.pop %v974
    %v976 = vadd.f32 %v975, 1.0
    %v977 = vrcp.pop %v976
    %v978 = vmul.f32 1.0, %v977
    %980 = vrot.lane.b32.xlu0 %v969, 64
    %v981 = vpop.permute.xlu0 %980
    %v983 = vmul.f32 %v978, %v981
    %985 = vrot.lane.b32.xlu0 %v983, 64
    %v986 = vpop.permute.xlu0 %985
    %v988 = vadd.f32 %v142, %v986
    %v989 = vtanh.pop %v988
    %v990 = vsub.f32 1.0, %v978
    %992 = vrot.lane.b32.xlu0 %v989, 96
    %v993 = vpop.permute.xlu0 %992
    %v995 = vmul.f32 %v990, %v993
    %v996 = vmul.f32 %v978, %v896
    %v997 = vadd.f32 %v995, %v996
    %v998 = vld [vmem:[%s5] sm:$0xff]
    %v999 = vld [vmem:[%s5 + $0x8] sm:$0xff]
    %v1000 = vld [vmem:[%s5 + $0x10] sm:$0xff]
    %v1001 = vld [vmem:[%s5 + $0x18] sm:$0xff]
    %v1002 = vld [vmem:[%s6] sm:$0x1]
    %v1004 = vlaneseq
    %v1005 = vshrl.u32 %v1004, 7
    %v1006 = vsub.s32 0, %v1005
    %v1007 = vrot.slane %v1002, %v1006
    %1010 = vrot.lane.b32.xlu0 %v997, 96
    %v1011 = vpop.permute.xlu0 %1010
    %v1012 = vsel %vm191, %v1011, 0
    %1014 = vmatprep.subr.mxu0 0.0
    %1015 = vmatpush1.msra.mxu0 %v998
    %1016 = vmatprep.subr.mxu0 0.0
    %1017 = vmatpush1.msra.mxu0 %v999
    %1018 = vmatprep.subr.mxu0 0.0
    %1019 = vmatpush1.msra.mxu0 %v1000
    %1020 = vmatprep.subr.mxu0 0.0
    %1021 = vmatpush1.msra.mxu0 %v1001
    %1022 = vmatprep.subr.mxu0 0.0
    %1023 = vmatpush1.msra.mxu0 0.0
    %1024 = vmatprep.subr.mxu0 0.0
    %1025 = vmatpush1.msra.mxu0 0.0
    %1026 = vmatprep.subr.mxu0 0.0
    %1027 = vmatpush1.msra.mxu0 0.0
    %1028 = vmatprep.subr.mxu0 0.0
    %1029 = vmatpush1.msra.mxu0 0.0
    %1030 = vmatprep.subr.mxu0 0.0
    %1031 = vmatpush1.msra.mxu0 0.0
    %1032 = vmatprep.subr.mxu0 0.0
    %1033 = vmatpush1.msra.mxu0 0.0
    %1034 = vmatprep.subr.mxu0 0.0
    %1035 = vmatpush1.msra.mxu0 0.0
    %1036 = vmatprep.subr.mxu0 0.0
    %1037 = vmatpush1.msra.mxu0 0.0
    %1038 = vmatprep.subr.mxu0 0.0
    %1039 = vmatpush1.msra.mxu0 0.0
    %1040 = vmatprep.subr.mxu0 0.0
    %1041 = vmatpush1.msra.mxu0 0.0
    %1042 = vmatprep.subr.mxu0 0.0
    %1043 = vmatpush1.msra.mxu0 0.0
    %1044 = vmatprep.subr.mxu0 0.0
    %1045 = vmatpush1.msra.mxu0 0.0
    %1046 = vmatprep.subr.mxu0 0.0
    %1047 = vmatpush1.msra.mxu0 0.0
    %1048 = vmatprep.subr.mxu0 0.0
    %1049 = vmatpush1.msra.mxu0 0.0
    %1050 = vmatprep.subr.mxu0 0.0
    %1051 = vmatpush1.msra.mxu0 0.0
    %1052 = vmatprep.subr.mxu0 0.0
    %1053 = vmatpush1.msra.mxu0 0.0
    %1054 = vmatprep.subr.mxu0 0.0
    %1055 = vmatpush1.msra.mxu0 0.0
    %1056 = vmatprep.subr.mxu0 0.0
    %1057 = vmatpush1.msra.mxu0 0.0
    %1058 = vmatprep.subr.mxu0 0.0
    %1059 = vmatpush1.msra.mxu0 0.0
    %1060 = vmatprep.subr.mxu0 0.0
    %1061 = vmatpush1.msra.mxu0 0.0
    %1062 = vmatprep.subr.mxu0 0.0
    %1063 = vmatpush1.msra.mxu0 0.0
    %1064 = vmatprep.subr.mxu0 0.0
    %1065 = vmatpush1.msra.mxu0 0.0
    %1066 = vmatprep.subr.mxu0 0.0
    %1067 = vmatpush1.msra.mxu0 0.0
    %1068 = vmatprep.subr.mxu0 0.0
    %1069 = vmatpush1.msra.mxu0 0.0
    %1070 = vmatprep.subr.mxu0 0.0
    %1071 = vmatpush1.msra.mxu0 0.0
    %1072 = vmatprep.subr.mxu0 0.0
    %1073 = vmatpush1.msra.mxu0 0.0
    %1074 = vmatprep.subr.mxu0 0.0
    %1075 = vmatpush1.msra.mxu0 0.0
    %1076 = vmatprep.subr.mxu0 0.0
    %1077 = vmatpush1.msra.mxu0 0.0
    %1078 = vmatprep.mubr.f32.mxu0 0.0
    %1079 = vmatmul.mubr.f32.gmra.mrb[0].mxu0 %v1012
    %v1080 = vpop.f32.mrb[0].mxu0
    %v1081 = vadd.f32 %v1007, %v1080
    %v1082 = vpop.f32.mrb[0].mxu0
    %1083 = vdwg.mxu0
    %v1084 = vmax.f32 %v1081, 0.0
    %v1085 = vld [vmem:[%s7] sm:$0xff]
    %v1086 = vld [vmem:[%s7 + $0x8] sm:$0xff]
    %v1087 = vld [vmem:[%s7 + $0x10] sm:$0xff]
    %v1088 = vld [vmem:[%s7 + $0x18] sm:$0xff]
    %v1089 = vld [vmem:[%s8] sm:$0x1]
    %v1091 = vlaneseq
    %v1092 = vshrl.u32 %v1091, 7
    %v1093 = vsub.s32 0, %v1092
    %v1094 = vrot.slane %v1089, %v1093
    %v1097 = vsel %vm191, %v1084, 0
    %1099 = vmatprep.subr.mxu0 0.0
    %1100 = vmatpush1.msra.mxu0 %v1085
    %1101 = vmatprep.subr.mxu0 0.0
    %1102 = vmatpush1.msra.mxu0 %v1086
    %1103 = vmatprep.subr.mxu0 0.0
    %1104 = vmatpush1.msra.mxu0 %v1087
    %1105 = vmatprep.subr.mxu0 0.0
    %1106 = vmatpush1.msra.mxu0 %v1088
    %1107 = vmatprep.subr.mxu0 0.0
    %1108 = vmatpush1.msra.mxu0 0.0
    %1109 = vmatprep.subr.mxu0 0.0
    %1110 = vmatpush1.msra.mxu0 0.0
    %1111 = vmatprep.subr.mxu0 0.0
    %1112 = vmatpush1.msra.mxu0 0.0
    %1113 = vmatprep.subr.mxu0 0.0
    %1114 = vmatpush1.msra.mxu0 0.0
    %1115 = vmatprep.subr.mxu0 0.0
    %1116 = vmatpush1.msra.mxu0 0.0
    %1117 = vmatprep.subr.mxu0 0.0
    %1118 = vmatpush1.msra.mxu0 0.0
    %1119 = vmatprep.subr.mxu0 0.0
    %1120 = vmatpush1.msra.mxu0 0.0
    %1121 = vmatprep.subr.mxu0 0.0
    %1122 = vmatpush1.msra.mxu0 0.0
    %1123 = vmatprep.subr.mxu0 0.0
    %1124 = vmatpush1.msra.mxu0 0.0
    %1125 = vmatprep.subr.mxu0 0.0
    %1126 = vmatpush1.msra.mxu0 0.0
    %1127 = vmatprep.subr.mxu0 0.0
    %1128 = vmatpush1.msra.mxu0 0.0
    %1129 = vmatprep.subr.mxu0 0.0
    %1130 = vmatpush1.msra.mxu0 0.0
    %1131 = vmatprep.subr.mxu0 0.0
    %1132 = vmatpush1.msra.mxu0 0.0
    %1133 = vmatprep.subr.mxu0 0.0
    %1134 = vmatpush1.msra.mxu0 0.0
    %1135 = vmatprep.subr.mxu0 0.0
    %1136 = vmatpush1.msra.mxu0 0.0
    %1137 = vmatprep.subr.mxu0 0.0
    %1138 = vmatpush1.msra.mxu0 0.0
    %1139 = vmatprep.subr.mxu0 0.0
    %1140 = vmatpush1.msra.mxu0 0.0
    %1141 = vmatprep.subr.mxu0 0.0
    %1142 = vmatpush1.msra.mxu0 0.0
    %1143 = vmatprep.subr.mxu0 0.0
    %1144 = vmatpush1.msra.mxu0 0.0
    %1145 = vmatprep.subr.mxu0 0.0
    %1146 = vmatpush1.msra.mxu0 0.0
    %1147 = vmatprep.subr.mxu0 0.0
    %1148 = vmatpush1.msra.mxu0 0.0
    %1149 = vmatprep.subr.mxu0 0.0
    %1150 = vmatpush1.msra.mxu0 0.0
    %1151 = vmatprep.subr.mxu0 0.0
    %1152 = vmatpush1.msra.mxu0 0.0
    %1153 = vmatprep.subr.mxu0 0.0
    %1154 = vmatpush1.msra.mxu0 0.0
    %1155 = vmatprep.subr.mxu0 0.0
    %1156 = vmatpush1.msra.mxu0 0.0
    %1157 = vmatprep.subr.mxu0 0.0
    %1158 = vmatpush1.msra.mxu0 0.0
    %1159 = vmatprep.subr.mxu0 0.0
    %1160 = vmatpush1.msra.mxu0 0.0
    %1161 = vmatprep.subr.mxu0 0.0
    %1162 = vmatpush1.msra.mxu0 0.0
    %1163 = vmatprep.mubr.f32.mxu0 0.0
    %1164 = vmatmul.mubr.f32.gmra.mrb[0].mxu0 %v1097
    %v1165 = vpop.f32.mrb[0].mxu0
    %v1166 = vadd.f32 %v1094, %v1165
    %v1167 = vpop.f32.mrb[0].mxu0
    %1168 = vdwg.mxu0
    %vm1169 = vcmask 64512
    %1170 = vst.msk [vmem:[#allocation2] sm:$0xff] %vm1169, %v1166
    // Predicated region
    $region38: #{tpu_custom_call.1} parent=1 // pred_check
      _
    $region39: #{tpu_custom_call.1} parent=1 // pred_check_branch
      %1172 = sbr.rel (0) target = $region41
    $region40: #{tpu_custom_call.1} parent=1 // pred_region
      %s1174 = ssub.s32 128, 128
      %1175 = vsyncadd [#allocation3], %s1174
      %s1177 = sshll.u32 [#allocation2], 4
      %s1178 = int_to_ptr.vmem [resolvable:$true] %s1177
      %1180 = dma.vmem_to_hbm [thread:$0]  %s1178, 128, %s9, [#allocation3]
    $region41: #{tpu_custom_call.1} parent=1 // pred_fallthru
      _
    // Predicated region
    $region42: #{tpu_custom_call.1} parent=1 // pred_check
      _
    $region43: #{tpu_custom_call.1} parent=1 // pred_check_branch
      %1182 = sbr.rel (0) target = $region45
    $region44: #{tpu_custom_call.1} parent=1 // pred_region
      %1183 = dma.done [#allocation3], 128
    $region45: #{tpu_custom_call.1} parent=1 // pred_fallthru
      _
    %1184 = vsyncpa [#allocation3], 1

</llo_original>
